<compile_context>
chip_gen: v6e
topology: v6e:2x2x1
jax: 0.10.0
libtpu: 0.0.40
codegen_flags: <defaults>
</compile_context>

<pallas_src>
import functools

import numpy as np
import jax
import jax.numpy as jnp
from jax.experimental import pallas as pl
from jax.experimental.pallas import tpu as pltpu


def _gat_kernel(asrc_ref, adst_ref, aout_ref, scnt_ref, hf_ref, o_ref,
                acc_ref, den_ref, *, num_heads, out_dim, tk, compute_dtype):
    """One (row-tile, column-chunk) grid step; heads statically unrolled (H small)."""
    k = pl.program_id(1)

    @pl.when(k == 0)
    def _init():
        acc_ref[...] = jnp.zeros_like(acc_ref)
        den_ref[...] = jnp.zeros_like(den_ref)

    aout = aout_ref[...].astype(jnp.float32)           # (tm, tk) numerator counts
    scnt = scnt_ref[...].astype(jnp.float32)           # (tm, tk) denominator counts
    # Column chunk of fc(h): hf is a resident full-extent [N, O] VMEM buffer.
    start = pl.multiple_of(k * tk, tk)
    hk = hf_ref[pl.ds(start, tk), :].astype(compute_dtype)      # (tk, O)

    for m in range(num_heads):                          # static unroll over heads
        logits = asrc_ref[:, m:m + 1] + adst_ref[m:m + 1, :]    # (tm, tk)
        e = jnp.where(logits >= 0, logits, 0.2 * logits)        # LeakyReLU(0.2)
        den_ref[:, m:m + 1] += jnp.sum(scnt * e, axis=1, keepdims=True)
        num = (aout * e).astype(compute_dtype)                  # (tm, tk)
        acc_ref[:, m * out_dim:(m + 1) * out_dim] += jnp.dot(
            num, hk, preferred_element_type=jnp.float32)

    @pl.when(k == pl.num_programs(1) - 1)
    def _finalize():
        for m in range(num_heads):
            s = den_ref[:, m:m + 1]                             # (tm, 1)
            # Reciprocal on the EUP; guarded so sum==0 (isolated node) -> out = 0.
            inv = jnp.where(s != 0.0, pl.reciprocal(s, approx=True), 0.0)
            out = acc_ref[:, m * out_dim:(m + 1) * out_dim] * inv
            o_ref[:, m * out_dim:(m + 1) * out_dim] = jnp.where(
                out > 0, out, jnp.exp(jnp.minimum(out, 0.0)) - 1.0)   # ELU


def _choose_tiles(n, tm, tk):
    """Pick (row tile, column chunk); fall back to full extent if not divisible."""
    if tm is None:
        tm = 128 if n % 128 == 0 else n        # MXU-aligned, safe under v7x 64 MiB VMEM
    if tk is None:
        tk = 128 if n % 128 == 0 else n        # raise to 256/512 for huge N on v5e/v6e
    if n % tm != 0 or (tm != n and tm % 16 != 0):
        tm = n
    if n % tk != 0 or (tk != n and tk % 128 != 0):
        tk = n
    return tm, tk


def gat_layer_forward(h, edge_index, w_att, b_att, w_fc, b_fc, *,
                      tm=None, tk=None, compute_dtype=jnp.float32):
    """h: [N, D] f32; edge_index: [E, 2] int pairs (src, dst) (i.e. `for pair in g`);
       w_att: [H, 2D]; b_att: [H]; w_fc: [O, D] (PyTorch layout); b_fc: [O].
       compute_dtype: dtype of the (A*e) @ fc(h) MXU matmul (bf16 on v6e/v7x)."""
    N, D = h.shape
    H = w_att.shape[0]
    O = w_fc.shape[0]

    src = edge_index[:, 0]
    dst = edge_index[:, 1]
    ones = jnp.ones((edge_index.shape[0],), jnp.float32)

    # A[i,k] = #edges (i,k);  S[i,x] = A[i,x] + A[x,i]*(x != i)  (the if/elif sum)
    aout = jnp.zeros((N, N), jnp.float32).at[src, dst].add(ones)
    scnt = aout + jnp.zeros((N, N), jnp.float32).at[dst, src].add(
        jnp.where(src != dst, 1.0, 0.0).astype(jnp.float32))
    # bf16 halves HBM traffic of the two dense [N,N] arrays.
    # NOTE: exact only while edge multiplicities stay <= 256 (bf16 integer range).
    aout = aout.astype(jnp.bfloat16)
    scnt = scnt.astype(jnp.bfloat16)

    # Tiny precomputed projections (replace the h^T input + per-head XLU reductions).
    # Attention bias is folded into a_src, so no per-head scalar input is needed.
    a_src = jnp.dot(h, jnp.transpose(w_att[:, :D])) + b_att[None, :]   # [N, H]
    a_dst = jnp.transpose(jnp.dot(h, jnp.transpose(w_att[:, D:])))     # [H, N]
    hf = jnp.dot(h, jnp.transpose(w_fc)) + b_fc[None, :]               # [N, O] = fc(h)

    tm, tk = _choose_tiles(N, tm, tk)
    grid = (N // tm, N // tk)

    kernel = functools.partial(_gat_kernel, num_heads=H, out_dim=O, tk=tk,
                               compute_dtype=compute_dtype)

    return pl.pallas_call(
        kernel,
        out_shape=jax.ShapeDtypeStruct((N, H * O), jnp.float32),
        grid=grid,
        in_specs=[
            pl.BlockSpec((tm, H), lambda i, k: (i, 0)),      # a_src row tile
            pl.BlockSpec((H, tk), lambda i, k: (0, k)),      # a_dst column chunk
            pl.BlockSpec((tm, tk), lambda i, k: (i, k)),     # A   (bf16)
            pl.BlockSpec((tm, tk), lambda i, k: (i, k)),     # S   (bf16)
            pl.BlockSpec((N, O), lambda i, k: (0, 0)),       # fc(h), resident full-extent
        ],
        out_specs=pl.BlockSpec((tm, H * O), lambda i, k: (i, 0)),   # lane-dense output
        scratch_shapes=[
            pltpu.VMEM((tm, H * O), jnp.float32),            # per-head numerator acc
            pltpu.VMEM((tm, H), jnp.float32),                # per-head denominator acc
        ],
        compiler_params=pltpu.CompilerParams(
            dimension_semantics=("parallel", "arbitrary"),   # rows shard across v7x TCs
            vmem_limit_bytes=48 * 1024 * 1024),
    )(a_src, a_dst, aout, scnt, hf)


# ----------------------------- references ----------------------------------

def reference_numpy_loops(h, edges, w_att, b_att, w_fc, b_fc, out_dim):
    """Literal transcription of GATLayer.forward (final=False branch, eval mode)."""
    N = h.shape[0]
    H = w_att.shape[0]

    def e_fn(m, i, x):
        hc = np.concatenate([h[i], h[x]])
        v = float(hc @ w_att[m] + b_att[m])
        return v if v >= 0.0 else 0.2 * v          # LeakyReLU(0.2)

    heads_out = []
    for m in range(H):
        out = np.zeros((N, out_dim), dtype=np.float64)
        for i in range(N):
            for (a, b) in edges:
                if a == i:
                    s = 0.0
                    for (p, q) in edges:
                        if p == i:
                            s += e_fn(m, i, q)
                        elif q == i:
                            s += e_fn(m, i, p)
                    alpha = e_fn(m, i, b) / s                     # dropout == identity
                    out[i] += alpha * (w_fc @ h[b] + b_fc)
        out = np.where(out > 0, out, np.exp(np.minimum(out, 0.0)) - 1.0)   # ELU
        heads_out.append(out)
    return np.concatenate(heads_out, axis=1)


def reference_numpy_dense(h, edges, w_att, b_att, w_fc, b_fc, out_dim):
    """Vectorized float64 reference of the same dense formulation."""
    N, D = h.shape
    H = w_att.shape[0]
    A = np.zeros((N, N), np.float64)
    for (a, b) in edges:
        A[int(a), int(b)] += 1.0
    S = A.copy()
    for (a, b) in edges:
        if int(a) != int(b):
            S[int(b), int(a)] += 1.0
    hf = h @ w_fc.T + b_fc
    outs = []
    for m in range(H):
        asrc = h @ w_att[m, :D] + b_att[m]
        adst = h @ w_att[m, D:]
        logits = asrc[:, None] + adst[None, :]
        e = np.where(logits >= 0, logits, 0.2 * logits)
        den = (S * e).sum(axis=1)
        num = (A * e) @ hf
        safe = np.where(den == 0.0, 1.0, den)
        out = np.where(den[:, None] != 0.0, num / safe[:, None], 0.0)
        out = np.where(out > 0, out, np.exp(np.minimum(out, 0.0)) - 1.0)
        outs.append(out)
    return np.concatenate(outs, axis=1)


# -------------------------------- tests ------------------------------------

if __name__ == "__main__":
    key = jax.random.PRNGKey(0)
    k1, k2, k3, k4, k5, k6, k7 = jax.random.split(key, 7)

    # ---- Test A: small graph, literal-loop reference, f32 matmul, row-tiled grid ----
    N, D, O, H = 32, 16, 16, 2
    h = jax.random.normal(k1, (N, D), jnp.float32)

    M = N - 2                       # node N-2 fully isolated; node N-1 has no outgoing edge
    edges = []
    for i in range(M):
        edges.append((i, (i + 1) % M))
        edges.append((i, (i + 3) % M))
    edges += [(0, 0), (5, 5), (2, 7), (2, 7), (10, N - 1), (4, N - 1)]
    edge_index = jnp.array(edges, dtype=jnp.int32)

    bound_att = (6.0 / (2 * D + 1)) ** 0.5
    w_att = jax.random.uniform(k2, (H, 2 * D), jnp.float32, -bound_att, bound_att)
    b_att = jax.random.uniform(k3, (H,), jnp.float32, -0.1, 0.1)
    bound_fc = (6.0 / (D + O)) ** 0.5
    w_fc = jax.random.uniform(k4, (O, D), jnp.float32, -bound_fc, bound_fc)
    b_fc = jax.random.uniform(k5, (O,), jnp.float32, -0.1, 0.1)

    out_a = gat_layer_forward(h, edge_index, w_att, b_att, w_fc, b_fc,
                              tm=16, compute_dtype=jnp.float32)   # grid = (2, 1)
    out_a = jax.block_until_ready(out_a)
    assert out_a.shape == (N, H * O)

    ref_a = reference_numpy_loops(
        np.asarray(h, np.float64), [(int(a), int(b)) for a, b in edges],
        np.asarray(w_att, np.float64), np.asarray(b_att, np.float64),
        np.asarray(w_fc, np.float64), np.asarray(b_fc, np.float64), O)
    np.testing.assert_allclose(np.asarray(out_a, np.float64), ref_a,
                               rtol=2e-3, atol=2e-3)
    # zero-denominator / no-outgoing-edge rows must be exactly zero (guard works)
    assert np.all(np.asarray(out_a)[N - 2] == 0.0)
    assert np.all(np.asarray(out_a)[N - 1] == 0.0)

    # ---- Test B: 128-aligned graph -> 2x2 grid, bf16 MXU matmul, dense reference ----
    NB, DB, OB, HB = 256, 32, 32, 4
    hB = jax.random.normal(k6, (NB, DB), jnp.float32)
    eb = []
    for i in range(NB - 1):                   # node NB-1 has no outgoing edge
        eb.append((i, (i + 1) % NB))
    for i in range(0, NB - 1, 2):
        eb.append((i, (i + 7) % NB))
    for i in range(0, NB - 1, 5):
        eb.append((i, i))
    eb += [(3, 11), (3, 11), (3, 11)]         # multiplicity test
    edge_index_b = jnp.array(eb, dtype=jnp.int32)

    kb1, kb2, kb3, kb4 = jax.random.split(k7, 4)
    bA = (6.0 / (2 * DB + 1)) ** 0.5
    w_att_b = jax.random.uniform(kb1, (HB, 2 * DB), jnp.float32, -bA, bA)
    b_att_b = jax.random.uniform(kb2, (HB,), jnp.float32, 2.0, 3.0)   # keeps denominators away from 0
    bF = (6.0 / (DB + OB)) ** 0.5
    w_fc_b = jax.random.uniform(kb3, (OB, DB), jnp.float32, -bF, bF)
    b_fc_b = jax.random.uniform(kb4, (OB,), jnp.float32, -0.1, 0.1)

    out_b = gat_layer_forward(hB, edge_index_b, w_att_b, b_att_b, w_fc_b, b_fc_b,
                              compute_dtype=jnp.bfloat16)          # tm=tk=128, grid=(2,2)
    out_b = jax.block_until_ready(out_b)
    assert out_b.shape == (NB, HB * OB)

    ref_b = reference_numpy_dense(
        np.asarray(hB, np.float64), eb,
        np.asarray(w_att_b, np.float64), np.asarray(b_att_b, np.float64),
        np.asarray(w_fc_b, np.float64), np.asarray(b_fc_b, np.float64), OB)
    np.testing.assert_allclose(np.asarray(out_b, np.float64), ref_b,
                               rtol=5e-2, atol=1e-1)   # bf16-MXU tolerance
    assert np.all(np.asarray(out_b)[NB - 1] == 0.0)    # node with no outgoing edges

    print("KERNEL_OK")
</pallas_src>

<mosaic_0001>
module attributes {stable_mosaic.version = 11 : i64} {
  func.func @_gat_kernel(%arg0: i32, %arg1: i32, %arg2: memref<16x2xf32, #tpu.memory_space<vmem>>, %arg3: memref<2x32xf32, #tpu.memory_space<vmem>>, %arg4: memref<16x32xbf16, #tpu.memory_space<vmem>>, %arg5: memref<16x32xbf16, #tpu.memory_space<vmem>>, %arg6: memref<32x16xf32, #tpu.memory_space<vmem>>, %arg7: memref<16x32xf32, #tpu.memory_space<vmem>>, %arg8: memref<16x32xf32, #tpu.memory_space<vmem>>, %arg9: memref<16x2xf32, #tpu.memory_space<vmem>>) attributes {dimension_semantics = [#tpu.dimension_semantics<parallel>, #tpu.dimension_semantics<arbitrary>], iteration_bounds = array<i64: 2, 1>, scalar_prefetch = 0 : i64, scratch_operands = 2 : i64, tpu.core_type = #tpu.core_type<tc>, window_params = [{transform_indices = @transform_0, window_bounds = array<i64: 16, 2>}, {transform_indices = @transform_1, window_bounds = array<i64: 2, 32>}, {transform_indices = @transform_2, window_bounds = array<i64: 16, 32>}, {transform_indices = @transform_3, window_bounds = array<i64: 16, 32>}, {pipeline_mode = #tpu.pipeline_mode<synchronous>, transform_indices = @transform_4, window_bounds = array<i64: 32, 16>}, {transform_indices = @transform_5, window_bounds = array<i64: 16, 32>}]} {
    %c0_i32 = arith.constant 0 : i32
    %0 = arith.cmpi eq, %arg1, %c0_i32 : i32
    %1 = arith.extui %0 : i1 to i32
    %c0_i32_0 = arith.constant 0 : i32
    %2 = arith.cmpi ne, %1, %c0_i32_0 : i32
    scf.if %2 {
      %cst_36 = arith.constant 0.000000e+00 : f32
      %56 = vector.broadcast %cst_36 : f32 to vector<16x32xf32>
      %c0_37 = arith.constant 0 : index
      %c0_38 = arith.constant 0 : index
      %57 = vector.load %arg8[%c0_37, %c0_38] : memref<16x32xf32, #tpu.memory_space<vmem>>, vector<16x32xf32>
      tpu.vector_store %arg8[%c0_37, %c0_38], %56 {strides = array<i32>} : memref<16x32xf32, #tpu.memory_space<vmem>>, vector<16x32xf32>,
      %cst_39 = arith.constant 0.000000e+00 : f32
      %58 = vector.broadcast %cst_39 : f32 to vector<16x2xf32>
      %c0_40 = arith.constant 0 : index
      %c0_41 = arith.constant 0 : index
      %59 = vector.load %arg9[%c0_40, %c0_41] : memref<16x2xf32, #tpu.memory_space<vmem>>, vector<16x2xf32>
      tpu.vector_store %arg9[%c0_40, %c0_41], %58 {strides = array<i32>} : memref<16x2xf32, #tpu.memory_space<vmem>>, vector<16x2xf32>,
    } else {
    }
    %c0 = arith.constant 0 : index
    %c0_1 = arith.constant 0 : index
    %3 = vector.load %arg4[%c0, %c0_1] : memref<16x32xbf16, #tpu.memory_space<vmem>>, vector<16x32xbf16>
    %4 = arith.extf %3 : vector<16x32xbf16> to vector<16x32xf32>
    %c0_2 = arith.constant 0 : index
    %c0_3 = arith.constant 0 : index
    %5 = vector.load %arg5[%c0_2, %c0_3] : memref<16x32xbf16, #tpu.memory_space<vmem>>, vector<16x32xbf16>
    %6 = arith.extf %5 : vector<16x32xbf16> to vector<16x32xf32>
    %c32_i32 = arith.constant 32 : i32
    %7 = arith.muli %arg1, %c32_i32 : i32
    %8 = tpu.assume_multiple %7, 32 : i32
    %9 = arith.index_cast %8 : i32 to index
    %c0_4 = arith.constant 0 : index
    %10 = vector.load %arg6[%9, %c0_4] : memref<32x16xf32, #tpu.memory_space<vmem>>, vector<32x16xf32>
    %c0_5 = arith.constant 0 : index
    %c0_6 = arith.constant 0 : index
    %11 = vector.load %arg2[%c0_5, %c0_6] : memref<16x2xf32, #tpu.memory_space<vmem>>, vector<16x1xf32>
    %c0_7 = arith.constant 0 : index
    %c0_8 = arith.constant 0 : index
    %12 = vector.load %arg3[%c0_7, %c0_8] : memref<2x32xf32, #tpu.memory_space<vmem>>, vector<1x32xf32>
    %13 = vector.broadcast %11 : vector<16x1xf32> to vector<16x32xf32>
    %14 = vector.broadcast %12 : vector<1x32xf32> to vector<16x32xf32>
    %15 = arith.addf %13, %14 : vector<16x32xf32>
    %cst = arith.constant 0.000000e+00 : f32
    %16 = vector.broadcast %cst : f32 to vector<16x32xf32>
    %17 = arith.cmpf oge, %15, %16 : vector<16x32xf32>
    %cst_9 = arith.constant 2.000000e-01 : f32
    %18 = vector.broadcast %cst_9 : f32 to vector<16x32xf32>
    %19 = arith.mulf %18, %15 : vector<16x32xf32>
    %20 = arith.select %17, %15, %19 : vector<16x32xi1>, vector<16x32xf32>
    %c0_10 = arith.constant 0 : index
    %c0_11 = arith.constant 0 : index
    %21 = vector.load %arg9[%c0_10, %c0_11] : memref<16x2xf32, #tpu.memory_space<vmem>>, vector<16x1xf32>
    %22 = arith.mulf %6, %20 : vector<16x32xf32>
    %cst_12 = arith.constant dense<0.000000e+00> : vector<16xf32>
    %23 = vector.multi_reduction <add>, %22, %cst_12 [1] : vector<16x32xf32> to vector<16xf32>
    %24 = vector.shape_cast %23 : vector<16xf32> to vector<16x1xf32>
    %25 = arith.addf %21, %24 : vector<16x1xf32>
    %c0_13 = arith.constant 0 : index
    %c0_14 = arith.constant 0 : index
    %26 = vector.load %arg9[%c0_13, %c0_14] : memref<16x2xf32, #tpu.memory_space<vmem>>, vector<16x1xf32>
    tpu.vector_store %arg9[%c0_13, %c0_14], %25 {strides = array<i32>} : memref<16x2xf32, #tpu.memory_space<vmem>>, vector<16x1xf32>,
    %27 = arith.mulf %4, %20 : vector<16x32xf32>
    %c0_15 = arith.constant 0 : index
    %c0_16 = arith.constant 0 : index
    %28 = vector.load %arg8[%c0_15, %c0_16] : memref<16x32xf32, #tpu.memory_space<vmem>>, vector<16x16xf32>
    %cst_17 = arith.constant dense<0.000000e+00> : vector<16x16xf32>
    %29 = tpu.matmul %27, %10, %cst_17 {dimension_numbers = #tpu.dot_dimension_numbers<[1], [0], [0], [1], [0, 0, 1, 1], [], []>} : vector<16x32xf32>, vector<32x16xf32>, vector<16x16xf32> -> vector<16x16xf32>
    %30 = arith.addf %28, %29 : vector<16x16xf32>
    %c0_18 = arith.constant 0 : index
    %c0_19 = arith.constant 0 : index
    %31 = vector.load %arg8[%c0_18, %c0_19] : memref<16x32xf32, #tpu.memory_space<vmem>>, vector<16x16xf32>
    tpu.vector_store %arg8[%c0_18, %c0_19], %30 {strides = array<i32>} : memref<16x32xf32, #tpu.memory_space<vmem>>, vector<16x16xf32>,
    %c0_20 = arith.constant 0 : index
    %c1 = arith.constant 1 : index
    %32 = vector.load %arg2[%c0_20, %c1] : memref<16x2xf32, #tpu.memory_space<vmem>>, vector<16x1xf32>
    %c1_21 = arith.constant 1 : index
    %c0_22 = arith.constant 0 : index
    %33 = vector.load %arg3[%c1_21, %c0_22] : memref<2x32xf32, #tpu.memory_space<vmem>>, vector<1x32xf32>
    %34 = vector.broadcast %32 : vector<16x1xf32> to vector<16x32xf32>
    %35 = vector.broadcast %33 : vector<1x32xf32> to vector<16x32xf32>
    %36 = arith.addf %34, %35 : vector<16x32xf32>
    %cst_23 = arith.constant 0.000000e+00 : f32
    %37 = vector.broadcast %cst_23 : f32 to vector<16x32xf32>
    %38 = arith.cmpf oge, %36, %37 : vector<16x32xf32>
    %cst_24 = arith.constant 2.000000e-01 : f32
    %39 = vector.broadcast %cst_24 : f32 to vector<16x32xf32>
    %40 = arith.mulf %39, %36 : vector<16x32xf32>
    %41 = arith.select %38, %36, %40 : vector<16x32xi1>, vector<16x32xf32>
    %c0_25 = arith.constant 0 : index
    %c1_26 = arith.constant 1 : index
    %42 = vector.load %arg9[%c0_25, %c1_26] : memref<16x2xf32, #tpu.memory_space<vmem>>, vector<16x1xf32>
    %43 = arith.mulf %6, %41 : vector<16x32xf32>
    %cst_27 = arith.constant dense<0.000000e+00> : vector<16xf32>
    %44 = vector.multi_reduction <add>, %43, %cst_27 [1] : vector<16x32xf32> to vector<16xf32>
    %45 = vector.shape_cast %44 : vector<16xf32> to vector<16x1xf32>
    %46 = arith.addf %42, %45 : vector<16x1xf32>
    %c0_28 = arith.constant 0 : index
    %c1_29 = arith.constant 1 : index
    %47 = vector.load %arg9[%c0_28, %c1_29] : memref<16x2xf32, #tpu.memory_space<vmem>>, vector<16x1xf32>
    tpu.vector_store %arg9[%c0_28, %c1_29], %46 {strides = array<i32>} : memref<16x2xf32, #tpu.memory_space<vmem>>, vector<16x1xf32>,
    %48 = arith.mulf %4, %41 : vector<16x32xf32>
    %c0_30 = arith.constant 0 : index
    %c16 = arith.constant 16 : index
    %49 = vector.load %arg8[%c0_30, %c16] : memref<16x32xf32, #tpu.memory_space<vmem>>, vector<16x16xf32>
    %cst_31 = arith.constant dense<0.000000e+00> : vector<16x16xf32>
    %50 = tpu.matmul %48, %10, %cst_31 {dimension_numbers = #tpu.dot_dimension_numbers<[1], [0], [0], [1], [0, 0, 1, 1], [], []>} : vector<16x32xf32>, vector<32x16xf32>, vector<16x16xf32> -> vector<16x16xf32>
    %51 = arith.addf %49, %50 : vector<16x16xf32>
    %c0_32 = arith.constant 0 : index
    %c16_33 = arith.constant 16 : index
    %52 = vector.load %arg8[%c0_32, %c16_33] : memref<16x32xf32, #tpu.memory_space<vmem>>, vector<16x16xf32>
    tpu.vector_store %arg8[%c0_32, %c16_33], %51 {strides = array<i32>} : memref<16x32xf32, #tpu.memory_space<vmem>>, vector<16x16xf32>,
    %c0_i32_34 = arith.constant 0 : i32
    %53 = arith.cmpi eq, %arg1, %c0_i32_34 : i32
    %54 = arith.extui %53 : i1 to i32
    %c0_i32_35 = arith.constant 0 : i32
    %55 = arith.cmpi ne, %54, %c0_i32_35 : i32
    scf.if %55 {
      %c0_36 = arith.constant 0 : index
      %c0_37 = arith.constant 0 : index
      %56 = vector.load %arg9[%c0_36, %c0_37] : memref<16x2xf32, #tpu.memory_space<vmem>>, vector<16x1xf32>
      %cst_38 = arith.constant 0.000000e+00 : f32
      %57 = vector.broadcast %cst_38 : f32 to vector<16x1xf32>
      %58 = arith.cmpf one, %56, %57 : vector<16x1xf32>
      %59 = tpu.reciprocal %56 {approx = true} : vector<16x1xf32> -> vector<16x1xf32>
      %cst_39 = arith.constant 0.000000e+00 : f32
      %60 = vector.broadcast %cst_39 : f32 to vector<16x1xf32>
      %61 = arith.select %58, %59, %60 : vector<16x1xi1>, vector<16x1xf32>
      %c0_40 = arith.constant 0 : index
      %c0_41 = arith.constant 0 : index
      %62 = vector.load %arg8[%c0_40, %c0_41] : memref<16x32xf32, #tpu.memory_space<vmem>>, vector<16x16xf32>
      %63 = vector.broadcast %61 : vector<16x1xf32> to vector<16x16xf32>
      %64 = arith.mulf %62, %63 : vector<16x16xf32>
      %cst_42 = arith.constant 0.000000e+00 : f32
      %65 = vector.broadcast %cst_42 : f32 to vector<16x16xf32>
      %66 = arith.cmpf ogt, %64, %65 : vector<16x16xf32>
      %cst_43 = arith.constant 0.000000e+00 : f32
      %67 = vector.broadcast %cst_43 : f32 to vector<16x16xf32>
      %68 = arith.minimumf %64, %67 : vector<16x16xf32>
      %69 = math.exp %68 : vector<16x16xf32>
      %cst_44 = arith.constant 1.000000e+00 : f32
      %70 = vector.broadcast %cst_44 : f32 to vector<16x16xf32>
      %71 = arith.subf %69, %70 : vector<16x16xf32>
      %72 = arith.select %66, %64, %71 : vector<16x16xi1>, vector<16x16xf32>
      %c0_45 = arith.constant 0 : index
      %c0_46 = arith.constant 0 : index
      %73 = vector.load %arg7[%c0_45, %c0_46] : memref<16x32xf32, #tpu.memory_space<vmem>>, vector<16x16xf32>
      tpu.vector_store %arg7[%c0_45, %c0_46], %72 {strides = array<i32>} : memref<16x32xf32, #tpu.memory_space<vmem>>, vector<16x16xf32>,
      %c0_47 = arith.constant 0 : index
      %c1_48 = arith.constant 1 : index
      %74 = vector.load %arg9[%c0_47, %c1_48] : memref<16x2xf32, #tpu.memory_space<vmem>>, vector<16x1xf32>
      %cst_49 = arith.constant 0.000000e+00 : f32
      %75 = vector.broadcast %cst_49 : f32 to vector<16x1xf32>
      %76 = arith.cmpf one, %74, %75 : vector<16x1xf32>
      %77 = tpu.reciprocal %74 {approx = true} : vector<16x1xf32> -> vector<16x1xf32>
      %cst_50 = arith.constant 0.000000e+00 : f32
      %78 = vector.broadcast %cst_50 : f32 to vector<16x1xf32>
      %79 = arith.select %76, %77, %78 : vector<16x1xi1>, vector<16x1xf32>
      %c0_51 = arith.constant 0 : index
      %c16_52 = arith.constant 16 : index
      %80 = vector.load %arg8[%c0_51, %c16_52] : memref<16x32xf32, #tpu.memory_space<vmem>>, vector<16x16xf32>
      %81 = vector.broadcast %79 : vector<16x1xf32> to vector<16x16xf32>
      %82 = arith.mulf %80, %81 : vector<16x16xf32>
      %cst_53 = arith.constant 0.000000e+00 : f32
      %83 = vector.broadcast %cst_53 : f32 to vector<16x16xf32>
      %84 = arith.cmpf ogt, %82, %83 : vector<16x16xf32>
      %cst_54 = arith.constant 0.000000e+00 : f32
      %85 = vector.broadcast %cst_54 : f32 to vector<16x16xf32>
      %86 = arith.minimumf %82, %85 : vector<16x16xf32>
      %87 = math.exp %86 : vector<16x16xf32>
      %cst_55 = arith.constant 1.000000e+00 : f32
      %88 = vector.broadcast %cst_55 : f32 to vector<16x16xf32>
      %89 = arith.subf %87, %88 : vector<16x16xf32>
      %90 = arith.select %84, %82, %89 : vector<16x16xi1>, vector<16x16xf32>
      %c0_56 = arith.constant 0 : index
      %c16_57 = arith.constant 16 : index
      %91 = vector.load %arg7[%c0_56, %c16_57] : memref<16x32xf32, #tpu.memory_space<vmem>>, vector<16x16xf32>
      tpu.vector_store %arg7[%c0_56, %c16_57], %90 {strides = array<i32>} : memref<16x32xf32, #tpu.memory_space<vmem>>, vector<16x16xf32>,
    } else {
    }
    return
  }
  func.func @transform_0(%arg0: i32, %arg1: i32) -> (i32, i32) {
    %c0_i32 = arith.constant 0 : i32
    %c0_i32_0 = arith.constant 0 : i32
    return %arg0, %c0_i32 : i32, i32
  }
  func.func @transform_1(%arg0: i32, %arg1: i32) -> (i32, i32) {
    %c0_i32 = arith.constant 0 : i32
    %c0_i32_0 = arith.constant 0 : i32
    return %c0_i32, %arg1 : i32, i32
  }
  func.func @transform_2(%arg0: i32, %arg1: i32) -> (i32, i32) {
    %c0_i32 = arith.constant 0 : i32
    return %arg0, %arg1 : i32, i32
  }
  func.func @transform_3(%arg0: i32, %arg1: i32) -> (i32, i32) {
    %c0_i32 = arith.constant 0 : i32
    return %arg0, %arg1 : i32, i32
  }
  func.func @transform_4(%arg0: i32, %arg1: i32) -> (i32, i32) {
    %c0_i32 = arith.constant 0 : i32
    %c0_i32_0 = arith.constant 0 : i32
    %c0_i32_1 = arith.constant 0 : i32
    return %c0_i32, %c0_i32_0 : i32, i32
  }
  func.func @transform_5(%arg0: i32, %arg1: i32) -> (i32, i32) {
    %c0_i32 = arith.constant 0 : i32
    %c0_i32_0 = arith.constant 0 : i32
    return %arg0, %c0_i32 : i32, i32
  }
}

</mosaic_0001>

<llo_original>
// kernel: tpu_custom_call.1
$region0: #{tpu_custom_call.1}
  #allocation0 [shape = 'u32[]', space=smem, size = 0x4, offset = 0x4, fixed_abs, tag = 'smem constant byte address 0x4 - core index']
  #allocation1 [shape = 'u32[144,128]{1,0:T(1,128)}', space=vmem, size = 0x12000, scoped, tag = 'internal scratch']
  #allocation2 [shape = 'f32[16,32]{1,0:T(8,128)}', space=vmem, size = 0x2000, scoped, tag = 'scratch operand']
  #allocation3 [shape = 'f32[16,2]{1,0:T(8,128)}', space=vmem, size = 0x2000, scoped, tag = 'scratch operand']
  %s0 = inlined_call_operand.vmem [shape: f32[32,2], index: 0, kind: input, shape index: {}]
  %s1 = inlined_call_operand.vmem [shape: f32[2,32], index: 1, kind: input, shape index: {}]
  %s2 = inlined_call_operand.vmem [shape: bf16[32,32], index: 2, kind: input, shape index: {}]
  %s3 = inlined_call_operand.vmem [shape: bf16[32,32], index: 3, kind: input, shape index: {}]
  %s4 = inlined_call_operand.vmem [shape: f32[32,16], index: 4, kind: input, shape index: {}]
  %s5 = inlined_call_operand.hbm [shape: f32[32,32], index: 5, kind: output, shape index: {}]
  %s6 = sld [smem:[#allocation0]]
  $region61: #{tpu_custom_call.1} parent=0
    _
  %s8 = ssub.s32 1, %s6
  %s9 = scalar_select 0, %s8, %s6
  $region1: #{tpu_custom_call.1} parent=0
    #allocation4 [shape = 'u8[16384]{0}', space=vmem, size = 0x4000, scoped, tag = 'output window, operand 0']
    #allocation5 [shape = 's32[2]{0}', space=sflag, size = 0x8, scoped, tag = 'scoped memory for tpu_custom_call.1']
    %10 = vsyncpa [#allocation5], 0
    %s11 = scalar_lea.sflag [#allocation5], 1
    %12 = vsyncpa %s11, 0
    loop: start=0, step=1, limit=4
    $region2: #{tpu_custom_call.1} parent=1 // loop_pre_header
      _
    $region3: #{tpu_custom_call.1} parent=1 // loop_header
      %s14 = sphi 0, %s18
      %p15 = scmp.ge.s32.totalorder %s14, 4
      %s21 = sphi 0, %s33
      %s22 = sphi 0, %s29
      %s23 = sphi 0, %s21
      %s24 = sphi 0, %s22
      %s25 = sphi 0, %s23
      %s26 = sphi 0, %s24
      %s36 = sphi 0, %s38
      %s39 = sphi 0, %s36
      %s40 = sphi 0, %s39
      %s56 = sphi 0, %s40
      %s62 = sphi 0, %s64
      %s65 = sphi 0, %s62
      %s66 = sphi 0, %s65
      %s82 = sphi 0, %s66
      %s90 = sphi 0, %s92
      %s93 = sphi 0, %s90
      %s94 = sphi 0, %s93
      %s110 = sphi 0, %s94
      %s118 = sphi 0, %s120
      %s121 = sphi 0, %s118
      %s122 = sphi 0, %s121
      %s138 = sphi 0, %s122
      %s142 = sphi 0, %s142
      %s144 = sphi 0, %s142
      %s145 = sphi 0, %s144
      %s159 = sphi 0, %s145
      %s165 = sphi 0, %s167
      %s168 = sphi 0, %s165
      %s169 = sphi 0, %s168
      %s185 = sphi 0, %s169
    $region4: #{tpu_custom_call.1} parent=1 // loop_header_branch
      %17 = sbr.rel (%p15) target = $region8
    $region5: #{tpu_custom_call.1} parent=1 // loop_body
      %s19 = ssub.s32 %s14, 1
      %s20 = ssub.s32 %s14, 2
      %s27 = sadd.s32 1, %s22
      %p28 = scmp.ge.s32.totalorder %s27, 1
      %s29 = scalar_select %p28, 0, %s27
      %s30 = sadd.s32 1, %s21
      %s31 = scalar_select %p28, %s30, %s21
      %p32 = scmp.ge.s32.totalorder %s31, 2
      %s33 = scalar_select %p32, 0, %s31
      %s34 = ssub.s32 %s21, %s33
      %p35 = scmp.eq.s32.totalorder %s34, 0
      %s37 = sadd.s32 %s36, 1
      %s38 = scalar_select %p35, %s36, %s37
      %p41 = pneg %p35
      %p42 = scmp.eq.s32.totalorder %s14, 1
      %p43 = por %p41, %p42
      %p44 = scmp.ne.s32.totalorder %s36, %s39
      %p45 = scmp.eq.s32.totalorder %s14, 0
      %p46 = por %p44, %p45
      %p47 = scmp.ne.s32.totalorder %s36, %s39
      %p48 = scmp.eq.s32.totalorder %s19, 1
      %p49 = por %p47, %p48
      %p50 = scmp.ne.s32.totalorder %s39, %s40
      %p51 = scmp.eq.s32.totalorder %s19, 0
      %p52 = por %p50, %p51
      %p53 = scmp.ne.s32.totalorder %s39, %s40
      %p54 = scmp.eq.s32.totalorder %s20, 1
      %p55 = por %p53, %p54
      %p57 = scmp.ne.s32.totalorder %s40, %s56
      %p58 = scmp.eq.s32.totalorder %s20, 0
      %p59 = por %p57, %p58
      %s60 = ssub.s32 %s22, %s29
      %p61 = scmp.eq.s32.totalorder %s60, 0
      %s63 = sadd.s32 %s62, 1
      %s64 = scalar_select %p61, %s62, %s63
      %p67 = pneg %p61
      %p68 = scmp.eq.s32.totalorder %s14, 1
      %p69 = por %p67, %p68
      %p70 = scmp.ne.s32.totalorder %s62, %s65
      %p71 = scmp.eq.s32.totalorder %s14, 0
      %p72 = por %p70, %p71
      %p73 = scmp.ne.s32.totalorder %s62, %s65
      %p74 = scmp.eq.s32.totalorder %s19, 1
      %p75 = por %p73, %p74
      %p76 = scmp.ne.s32.totalorder %s65, %s66
      %p77 = scmp.eq.s32.totalorder %s19, 0
      %p78 = por %p76, %p77
      %p79 = scmp.ne.s32.totalorder %s65, %s66
      %p80 = scmp.eq.s32.totalorder %s20, 1
      %p81 = por %p79, %p80
      %p83 = scmp.ne.s32.totalorder %s66, %s82
      %p84 = scmp.eq.s32.totalorder %s20, 0
      %p85 = por %p83, %p84
      %s86 = ssub.s32 %s21, %s33
      %s87 = ssub.s32 %s22, %s29
      %s88 = sor.u32 %s86, %s87
      %p89 = scmp.eq.s32.totalorder %s88, 0
      %s91 = sadd.s32 %s90, 1
      %s92 = scalar_select %p89, %s90, %s91
      %p95 = pneg %p89
      %p96 = scmp.eq.s32.totalorder %s14, 1
      %p97 = por %p95, %p96
      %p98 = scmp.ne.s32.totalorder %s90, %s93
      %p99 = scmp.eq.s32.totalorder %s14, 0
      %p100 = por %p98, %p99
      %p101 = scmp.ne.s32.totalorder %s90, %s93
      %p102 = scmp.eq.s32.totalorder %s19, 1
      %p103 = por %p101, %p102
      %p104 = scmp.ne.s32.totalorder %s93, %s94
      %p105 = scmp.eq.s32.totalorder %s19, 0
      %p106 = por %p104, %p105
      %p107 = scmp.ne.s32.totalorder %s93, %s94
      %p108 = scmp.eq.s32.totalorder %s20, 1
      %p109 = por %p107, %p108
      %p111 = scmp.ne.s32.totalorder %s94, %s110
      %p112 = scmp.eq.s32.totalorder %s20, 0
      %p113 = por %p111, %p112
      %s114 = ssub.s32 %s21, %s33
      %s115 = ssub.s32 %s22, %s29
      %s116 = sor.u32 %s114, %s115
      %p117 = scmp.eq.s32.totalorder %s116, 0
      %s119 = sadd.s32 %s118, 1
      %s120 = scalar_select %p117, %s118, %s119
      %p123 = pneg %p117
      %p124 = scmp.eq.s32.totalorder %s14, 1
      %p125 = por %p123, %p124
      %p126 = scmp.ne.s32.totalorder %s118, %s121
      %p127 = scmp.eq.s32.totalorder %s14, 0
      %p128 = por %p126, %p127
      %p129 = scmp.ne.s32.totalorder %s118, %s121
      %p130 = scmp.eq.s32.totalorder %s19, 1
      %p131 = por %p129, %p130
      %p132 = scmp.ne.s32.totalorder %s121, %s122
      %p133 = scmp.eq.s32.totalorder %s19, 0
      %p134 = por %p132, %p133
      %p135 = scmp.ne.s32.totalorder %s121, %s122
      %p136 = scmp.eq.s32.totalorder %s20, 1
      %p137 = por %p135, %p136
      %p139 = scmp.ne.s32.totalorder %s122, %s138
      %p140 = scmp.eq.s32.totalorder %s20, 0
      %p141 = por %p139, %p140
      %s143 = sadd.s32 %s142, 1
      %p146 = scmp.eq.s32.totalorder %s14, 1
      %p147 = scmp.ne.s32.totalorder %s142, %s144
      %p148 = scmp.eq.s32.totalorder %s14, 0
      %p149 = por %p147, %p148
      %p150 = scmp.ne.s32.totalorder %s142, %s144
      %p151 = scmp.eq.s32.totalorder %s19, 1
      %p152 = por %p150, %p151
      %p153 = scmp.ne.s32.totalorder %s144, %s145
      %p154 = scmp.eq.s32.totalorder %s19, 0
      %p155 = por %p153, %p154
      %p156 = scmp.ne.s32.totalorder %s144, %s145
      %p157 = scmp.eq.s32.totalorder %s20, 1
      %p158 = por %p156, %p157
      %p160 = scmp.ne.s32.totalorder %s145, %s159
      %p161 = scmp.eq.s32.totalorder %s20, 0
      %p162 = por %p160, %p161
      %s163 = ssub.s32 %s21, %s33
      %p164 = scmp.eq.s32.totalorder %s163, 0
      %s166 = sadd.s32 %s165, 1
      %s167 = scalar_select %p164, %s165, %s166
      %p170 = pneg %p164
      %p171 = scmp.eq.s32.totalorder %s14, 1
      %p172 = por %p170, %p171
      %p173 = scmp.ne.s32.totalorder %s165, %s168
      %p174 = scmp.eq.s32.totalorder %s14, 0
      %p175 = por %p173, %p174
      %p176 = scmp.ne.s32.totalorder %s165, %s168
      %p177 = scmp.eq.s32.totalorder %s19, 1
      %p178 = por %p176, %p177
      %p179 = scmp.ne.s32.totalorder %s168, %s169
      %p180 = scmp.eq.s32.totalorder %s19, 0
      %p181 = por %p179, %p180
      %p182 = scmp.ne.s32.totalorder %s168, %s169
      %p183 = scmp.eq.s32.totalorder %s20, 1
      %p184 = por %p182, %p183
      %p186 = scmp.ne.s32.totalorder %s169, %s185
      %p187 = scmp.eq.s32.totalorder %s20, 0
      %p188 = por %p186, %p187
      %p189 = scmp.le.s32.totalorder 1, %s14
      %p190 = scmp.lt.s32.totalorder %s14, 3
      %p191 = pnand %p189, %p190
      %p192 = pneg %p191
      // Predicated region
      $region9: #{tpu_custom_call.1} parent=5 // pred_check
        _
      $region10: #{tpu_custom_call.1} parent=5 // pred_check_branch
        %194 = sbr.rel (%p191) target = $region12
      $region11: #{tpu_custom_call.1} parent=5 // pred_region
        %s195 = ssub.s32 %s14, 1
        // Predicated region
        $region13: #{tpu_custom_call.1} parent=11 // pred_check
          %p196 = pneg %p78
        $region14: #{tpu_custom_call.1} parent=11 // pred_check_branch
          %198 = sbr.rel (%p196) target = $region16
        $region15: #{tpu_custom_call.1} parent=11 // pred_region
          %p199 = scmp.lt.s32.totalorder %s24, 0
          %s200 = scalar_select %p199, %s24, 0
          %s201 = smul.addr %s200, 2
          %s202 = scalar_lea.vmem %s1, %s201
        $region16: #{tpu_custom_call.1} parent=11 // pred_fallthru
          _
        // Predicated region
        $region17: #{tpu_custom_call.1} parent=11 // pred_check
          %p203 = pneg %p155
        $region18: #{tpu_custom_call.1} parent=11 // pred_check_branch
          %205 = sbr.rel (%p203) target = $region20
        $region19: #{tpu_custom_call.1} parent=11 // pred_region
          _
        $region20: #{tpu_custom_call.1} parent=11 // pred_fallthru
          _
      $region12: #{tpu_custom_call.1} parent=5 // pred_fallthru
        _
      %p206 = scmp.lt.s32.totalorder %s14, 2
      // Predicated region
      $region21: #{tpu_custom_call.1} parent=5 // pred_check
        %p207 = pneg %p206
      $region22: #{tpu_custom_call.1} parent=5 // pred_check_branch
        %209 = sbr.rel (%p207) target = $region24
      $region23: #{tpu_custom_call.1} parent=5 // pred_region
        // Predicated region
        $region25: #{tpu_custom_call.1} parent=23 // pred_check
          %p210 = pneg %p46
        $region26: #{tpu_custom_call.1} parent=23 // pred_check_branch
          %212 = sbr.rel (%p210) target = $region28
        $region27: #{tpu_custom_call.1} parent=23 // pred_region
          %s213 = smul.u32 2, %s21
          %p214 = scmp.lt.s32.totalorder %s213, 3
          %s215 = scalar_select %p214, %s213, 3
          %s216 = smul.addr %s215, 8
          %s217 = scalar_lea.vmem %s0, %s216
          %s218 = smul.u32 2, %s21
        $region28: #{tpu_custom_call.1} parent=23 // pred_fallthru
          _
        // Predicated region
        $region29: #{tpu_custom_call.1} parent=23 // pred_check
          %p219 = pneg %p100
        $region30: #{tpu_custom_call.1} parent=23 // pred_check_branch
          %221 = sbr.rel (%p219) target = $region32
        $region31: #{tpu_custom_call.1} parent=23 // pred_region
          %s222 = smul.u32 2, %s21
          %p223 = scmp.lt.s32.totalorder %s222, 3
          %s224 = scalar_select %p223, %s222, 3
          %p225 = scmp.lt.s32.totalorder %s22, 0
          %s226 = scalar_select %p225, %s22, 0
          %s227 = sadd.s32 %s226, %s224
          %s228 = smul.addr %s227, 4
          %s229 = scalar_lea.vmem %s2, %s228
          %s230 = smul.u32 2, %s21
        $region32: #{tpu_custom_call.1} parent=23 // pred_fallthru
          _
        // Predicated region
        $region33: #{tpu_custom_call.1} parent=23 // pred_check
          %p231 = pneg %p128
        $region34: #{tpu_custom_call.1} parent=23 // pred_check_branch
          %233 = sbr.rel (%p231) target = $region36
        $region35: #{tpu_custom_call.1} parent=23 // pred_region
          %s234 = smul.u32 2, %s21
          %p235 = scmp.lt.s32.totalorder %s234, 3
          %s236 = scalar_select %p235, %s234, 3
          %p237 = scmp.lt.s32.totalorder %s22, 0
          %s238 = scalar_select %p237, %s22, 0
          %s239 = sadd.s32 %s238, %s236
          %s240 = smul.addr %s239, 4
          %s241 = scalar_lea.vmem %s3, %s240
          %s242 = smul.u32 2, %s21
        $region36: #{tpu_custom_call.1} parent=23 // pred_fallthru
          _
      $region24: #{tpu_custom_call.1} parent=5 // pred_fallthru
        _
      %p243 = scmp.le.s32.totalorder 1, %s14
      %p244 = scmp.lt.s32.totalorder %s14, 3
      %p245 = pnand %p243, %p244
      %p246 = pneg %p245
      // Predicated region
      $region37: #{tpu_custom_call.1} parent=5 // pred_check
        _
      $region38: #{tpu_custom_call.1} parent=5 // pred_check_branch
        %248 = sbr.rel (%p245) target = $region40
      $region39: #{tpu_custom_call.1} parent=5 // pred_region
        %s249 = ssub.s32 %s14, 1
        %s250 = smul.u32 2, %s23
        %p251 = scmp.lt.s32.totalorder %s250, 3
        %s252 = scalar_select %p251, %s250, 3
        %s253 = smul.addr %s252, 8
        %s254 = scalar_lea.vmem %s0, %s253
        %p255 = pneg %p52
        %p256 = pneg %p49
        %p257 = scmp.lt.s32.totalorder %s24, 0
        %s258 = scalar_select %p257, %s24, 0
        %s259 = smul.addr %s258, 2
        %s260 = scalar_lea.vmem %s1, %s259
        %p261 = pneg %p78
        %p262 = pneg %p75
        %s263 = smul.u32 2, %s23
        %p264 = scmp.lt.s32.totalorder %s263, 3
        %s265 = scalar_select %p264, %s263, 3
        %p266 = scmp.lt.s32.totalorder %s24, 0
        %s267 = scalar_select %p266, %s24, 0
        %s268 = sadd.s32 %s267, %s265
        %s269 = smul.addr %s268, 4
        %s270 = scalar_lea.vmem %s2, %s269
        %p271 = pneg %p106
        %p272 = pneg %p103
        %s273 = smul.u32 2, %s23
        %p274 = scmp.lt.s32.totalorder %s273, 3
        %s275 = scalar_select %p274, %s273, 3
        %p276 = scmp.lt.s32.totalorder %s24, 0
        %s277 = scalar_select %p276, %s24, 0
        %s278 = sadd.s32 %s277, %s275
        %s279 = smul.addr %s278, 4
        %s280 = scalar_lea.vmem %s3, %s279
        %p281 = pneg %p134
        %p282 = pneg %p131
        %p283 = pneg %p155
        %p284 = pneg %p152
        %p285 = pneg %p181
        %p286 = pneg %p178
        %s287 = sand.u32 %s168, 1
        %s288 = scalar_lea.sflag [#allocation5], %s287
        %s289 = sand.u32 %s168, 1
        %s290 = smul.addr %s289, 16
        %s291 = scalar_lea.vmem [#allocation4], %s290
        %s292 = smul.u32 2, %s23
        %p293 = scmp.lt.s32.totalorder %s292, 3
        %s294 = scalar_select %p293, %s292, 3
        %s295 = smul.addr %s294, 8
        %s296 = scalar_lea.vmem %s0, %s295
        %s297 = smul.u32 2, %s23
        %p298 = scmp.lt.s32.totalorder %s24, 0
        %s299 = scalar_select %p298, %s24, 0
        %s300 = smul.addr %s299, 2
        %s301 = scalar_lea.vmem %s1, %s300
        %s302 = smul.u32 2, %s23
        %p303 = scmp.lt.s32.totalorder %s302, 3
        %s304 = scalar_select %p303, %s302, 3
        %p305 = scmp.lt.s32.totalorder %s24, 0
        %s306 = scalar_select %p305, %s24, 0
        %s307 = sadd.s32 %s306, %s304
        %s308 = smul.addr %s307, 4
        %s309 = scalar_lea.vmem %s2, %s308
        %s310 = smul.u32 2, %s23
        %s311 = smul.u32 2, %s23
        %p312 = scmp.lt.s32.totalorder %s311, 3
        %s313 = scalar_select %p312, %s311, 3
        %p314 = scmp.lt.s32.totalorder %s24, 0
        %s315 = scalar_select %p314, %s24, 0
        %s316 = sadd.s32 %s315, %s313
        %s317 = smul.addr %s316, 4
        %s318 = scalar_lea.vmem %s3, %s317
        %s319 = smul.u32 2, %s23
        %s320 = smul.u32 2, %s23
        %p321 = scmp.eq.s32.totalorder %s24, 0
        // Predicated region
        $region41: #{tpu_custom_call.1} parent=39 // pred_check
          %p322 = pneg %p321
        $region42: #{tpu_custom_call.1} parent=39 // pred_check_branch
          %324 = sbr.rel (%p322) target = $region44
        $region43: #{tpu_custom_call.1} parent=39 // pred_region
          %vm325 = vcmask 261120
          %326 = vst.msk [vmem:[#allocation2] sm:$0xff] %vm325, 0.0
          %327 = vst.msk [vmem:[#allocation2 + $0x8] sm:$0xff] %vm325, 0.0
          %vm328 = vcmask 15360
          %329 = vst.msk [vmem:[#allocation3] sm:$0xff] %vm328, 0.0
          %330 = vst.msk [vmem:[#allocation3 + $0x8] sm:$0xff] %vm328, 0.0
        $region44: #{tpu_custom_call.1} parent=39 // pred_fallthru
          _
        %v331 = vld [vmem:[%s309] sm:$0xf]
        %v332 = vld [vmem:[%s309 + $0x4] sm:$0xf]
        %v333 = vunpack.c.l.bf16 %v331
        %v334 = vunpack.c.l.bf16 %v332
        %v335 = vld [vmem:[%s318] sm:$0xf]
        %v336 = vld [vmem:[%s318 + $0x4] sm:$0xf]
        %v337 = vunpack.c.l.bf16 %v335
        %v338 = vunpack.c.l.bf16 %v336
        %s339 = smul.u32 %s24, 32
        %s340 = scalar_lea.vmem %s4, %s339
        %v341 = vld [vmem:[%s340] sm:$0xff]
        %v342 = vld [vmem:[%s340 + $0x8] sm:$0xff]
        %v343 = vld [vmem:[%s340 + $0x10] sm:$0xff]
        %v344 = vld [vmem:[%s340 + $0x18] sm:$0xff]
        %v345 = vld [vmem:[%s296] sm:$0xff]
        %v346 = vld [vmem:[%s296 + $0x8] sm:$0xff]
        %v347 = vld [vmem:[%s301] sm:$0x1]
        %349 = vset.pattern.permute.xlu0 0
        %350 = vperm.xlu0 %349, %v345
        %v351 = vpop.permute.xlu0 %350
        %354 = vset.pattern.permute.xlu0 0
        %355 = vperm.xlu0 %354, %v346
        %v356 = vpop.permute.xlu0 %355
        %v358 = vlaneseq
        %v359 = vshrl.u32 %v358, 7
        %v360 = vsub.s32 0, %v359
        %v361 = vrot.slane %v347, %v360
        %v362 = vadd.f32 %v351, %v361
        %v363 = vadd.f32 %v356, %v361
        %vm364 = vcmp.ge.f32.partialorder %v362, 0.0
        %vm365 = vcmp.ge.f32.partialorder %v363, 0.0
        %v366 = vmul.f32 %v362, 0.2
        %v367 = vmul.f32 %v363, 0.2
        %v368 = vsel %vm364, %v362, %v366
        %v369 = vsel %vm365, %v363, %v367
        %v370 = vld [vmem:[#allocation3] sm:$0xff]
        %v371 = vld [vmem:[#allocation3 + $0x8] sm:$0xff]
        %v372 = vmul.f32 %v337, %v368
        %v373 = vmul.f32 %v338, %v369
        %vm374 = vcmask 261120
        %v375 = vsel %vm374, %v372, 0.0
        %376 = vadd.xlane.f32.xlu0 %v375
        %v377 = vpop.xlane.xlu0 %376
        %v378 = vsel %vm374, %v373, 0.0
        %379 = vadd.xlane.f32.xlu0 %v378
        %v380 = vpop.xlane.xlu0 %379
        %v381 = vadd.f32 %v370, %v377
        %v382 = vadd.f32 %v371, %v380
        %vm383 = vcmask 7168
        %384 = vst.msk [vmem:[#allocation3] sm:$0xff] %vm383, %v381
        %385 = vst.msk [vmem:[#allocation3 + $0x8] sm:$0xff] %vm383, %v382
        %v386 = vmul.f32 %v333, %v368
        %v387 = vmul.f32 %v334, %v369
        %v388 = vld [vmem:[#allocation2] sm:$0xff]
        %v389 = vld [vmem:[#allocation2 + $0x8] sm:$0xff]
        %v391 = vsel %vm374, %v386, 0
        %v394 = vsel %vm374, %v387, 0
        %396 = vmatprep.subr.mxu0 0.0
        %397 = vmatpush1.msra.mxu0 0.0
        %398 = vmatprep.subr.mxu0 0.0
        %399 = vmatpush1.msra.mxu0 0.0
        %400 = vmatprep.subr.mxu0 0.0
        %401 = vmatpush1.msra.mxu0 0.0
        %402 = vmatprep.subr.mxu0 0.0
        %403 = vmatpush1.msra.mxu0 0.0
        %404 = vmatprep.subr.mxu0 0.0
        %405 = vmatpush1.msra.mxu0 0.0
        %406 = vmatprep.subr.mxu0 0.0
        %407 = vmatpush1.msra.mxu0 0.0
        %408 = vmatprep.subr.mxu0 0.0
        %409 = vmatpush1.msra.mxu0 0.0
        %410 = vmatprep.subr.mxu0 0.0
        %411 = vmatpush1.msra.mxu0 0.0
        %412 = vmatprep.subr.mxu0 0.0
        %413 = vmatpush1.msra.mxu0 0.0
        %414 = vmatprep.subr.mxu0 0.0
        %415 = vmatpush1.msra.mxu0 0.0
        %416 = vmatprep.subr.mxu0 0.0
        %417 = vmatpush1.msra.mxu0 0.0
        %418 = vmatprep.subr.mxu0 0.0
        %419 = vmatpush1.msra.mxu0 0.0
        %420 = vmatprep.subr.mxu0 0.0
        %421 = vmatpush1.msra.mxu0 %v344
        %422 = vmatprep.subr.mxu0 0.0
        %423 = vmatpush1.msra.mxu0 %v343
        %424 = vmatprep.subr.mxu0 0.0
        %425 = vmatpush1.msra.mxu0 %v342
        %426 = vmatprep.subr.mxu0 0.0
        %427 = vmatpush1.msra.mxu0 %v341
        %428 = vmatprep.subr.mxu0 0.0
        %429 = vmatpush2.msra.mxu0 0.0
        %430 = vmatprep.subr.mxu0 0.0
        %431 = vmatpush2.msra.mxu0 0.0
        %432 = vmatprep.subr.mxu0 0.0
        %433 = vmatpush2.msra.mxu0 0.0
        %434 = vmatprep.subr.mxu0 0.0
        %435 = vmatpush2.msra.mxu0 0.0
        %436 = vmatprep.subr.mxu0 0.0
        %437 = vmatpush2.msra.mxu0 0.0
        %438 = vmatprep.subr.mxu0 0.0
        %439 = vmatpush2.msra.mxu0 0.0
        %440 = vmatprep.subr.mxu0 0.0
        %441 = vmatpush2.msra.mxu0 0.0
        %442 = vmatprep.subr.mxu0 0.0
        %443 = vmatpush2.msra.mxu0 0.0
        %444 = vmatprep.subr.mxu0 0.0
        %445 = vmatpush2.msra.mxu0 0.0
        %446 = vmatprep.subr.mxu0 0.0
        %447 = vmatpush2.msra.mxu0 0.0
        %448 = vmatprep.subr.mxu0 0.0
        %449 = vmatpush2.msra.mxu0 0.0
        %450 = vmatprep.subr.mxu0 0.0
        %451 = vmatpush2.msra.mxu0 0.0
        %452 = vmatprep.subr.mxu0 0.0
        %453 = vmatpush2.msra.mxu0 0.0
        %454 = vmatprep.subr.mxu0 0.0
        %455 = vmatpush2.msra.mxu0 0.0
        %456 = vmatprep.subr.mxu0 0.0
        %457 = vmatpush2.msra.mxu0 0.0
        %458 = vmatprep.subr.mxu0 0.0
        %459 = vmatpush2.msra.mxu0 0.0
        %460 = vmatprep.mubr.f32.mxu0 0.0
        %461 = vmatmul.mubr.f32.gmra.mxu0 %v391
        %v462 = vpop.f32.mrf.mxu0
        %v463 = vadd.f32 0.0, %v462
        %v464 = vpop.f32.mrf.mxu0
        %465 = vmatprep.mubr.f32.mxu0 0.0
        %466 = vmatmul.mubr.f32.gmra.mxu0 %v394
        %v467 = vpop.f32.mrf.mxu0
        %v468 = vadd.f32 0.0, %v467
        %v469 = vpop.f32.mrf.mxu0
        %470 = vdwg.mxu0
        %v471 = vadd.f32 %v388, %v463
        %v472 = vadd.f32 %v389, %v468
        %vm473 = vcmask 130048
        %474 = vst.msk [vmem:[#allocation2] sm:$0xff] %vm473, %v471
        %475 = vst.msk [vmem:[#allocation2 + $0x8] sm:$0xff] %vm473, %v472
        %v476 = vld [vmem:[%s296] sm:$0xff]
        %v477 = vld [vmem:[%s296 + $0x8] sm:$0xff]
        %v478 = vld [vmem:[%s301 + $0x1] sm:$0x1]
        %480 = vset.pattern.permute.xlu0 1
        %481 = vperm.xlu0 %480, %v476
        %v482 = vpop.permute.xlu0 %481
        %485 = vset.pattern.permute.xlu0 1
        %486 = vperm.xlu0 %485, %v477
        %v487 = vpop.permute.xlu0 %486
        %v489 = vlaneseq
        %v490 = vshrl.u32 %v489, 7
        %v491 = vsub.s32 0, %v490
        %v492 = vrot.slane %v478, %v491
        %v493 = vadd.f32 %v482, %v492
        %v494 = vadd.f32 %v487, %v492
        %vm495 = vcmp.ge.f32.partialorder %v493, 0.0
        %vm496 = vcmp.ge.f32.partialorder %v494, 0.0
        %v497 = vmul.f32 %v493, 0.2
        %v498 = vmul.f32 %v494, 0.2
        %v499 = vsel %vm495, %v493, %v497
        %v500 = vsel %vm496, %v494, %v498
        %v501 = vld [vmem:[#allocation3] sm:$0xff]
        %v502 = vld [vmem:[#allocation3 + $0x8] sm:$0xff]
        %v503 = vmul.f32 %v337, %v499
        %v504 = vmul.f32 %v338, %v500
        %v505 = vsel %vm374, %v503, 0.0
        %506 = vadd.xlane.f32.xlu0 %v505
        %v507 = vpop.xlane.xlu0 %506
        %v508 = vsel %vm374, %v504, 0.0
        %509 = vadd.xlane.f32.xlu0 %v508
        %v510 = vpop.xlane.xlu0 %509
        %v511 = vadd.f32 %v501, %v507
        %v512 = vadd.f32 %v502, %v510
        %vm513 = vcmask 15368
        %514 = vst.msk [vmem:[#allocation3] sm:$0xff] %vm513, %v511
        %515 = vst.msk [vmem:[#allocation3 + $0x8] sm:$0xff] %vm513, %v512
        %v516 = vmul.f32 %v333, %v499
        %v517 = vmul.f32 %v334, %v500
        %v518 = vld [vmem:[#allocation2] sm:$0xff]
        %v519 = vld [vmem:[#allocation2 + $0x8] sm:$0xff]
        %v521 = vsel %vm374, %v516, 0
        %v524 = vsel %vm374, %v517, 0
        %526 = vmatprep.subr.mxu0 0.0
        %527 = vmatpush1.msra.mxu0 0.0
        %528 = vmatprep.subr.mxu0 0.0
        %529 = vmatpush1.msra.mxu0 0.0
        %530 = vmatprep.subr.mxu0 0.0
        %531 = vmatpush1.msra.mxu0 0.0
        %532 = vmatprep.subr.mxu0 0.0
        %533 = vmatpush1.msra.mxu0 0.0
        %534 = vmatprep.subr.mxu0 0.0
        %535 = vmatpush1.msra.mxu0 0.0
        %536 = vmatprep.subr.mxu0 0.0
        %537 = vmatpush1.msra.mxu0 0.0
        %538 = vmatprep.subr.mxu0 0.0
        %539 = vmatpush1.msra.mxu0 0.0
        %540 = vmatprep.subr.mxu0 0.0
        %541 = vmatpush1.msra.mxu0 0.0
        %542 = vmatprep.subr.mxu0 0.0
        %543 = vmatpush1.msra.mxu0 0.0
        %544 = vmatprep.subr.mxu0 0.0
        %545 = vmatpush1.msra.mxu0 0.0
        %546 = vmatprep.subr.mxu0 0.0
        %547 = vmatpush1.msra.mxu0 0.0
        %548 = vmatprep.subr.mxu0 0.0
        %549 = vmatpush1.msra.mxu0 0.0
        %550 = vmatprep.subr.mxu0 0.0
        %551 = vmatpush1.msra.mxu0 %v344
        %552 = vmatprep.subr.mxu0 0.0
        %553 = vmatpush1.msra.mxu0 %v343
        %554 = vmatprep.subr.mxu0 0.0
        %555 = vmatpush1.msra.mxu0 %v342
        %556 = vmatprep.subr.mxu0 0.0
        %557 = vmatpush1.msra.mxu0 %v341
        %558 = vmatprep.subr.mxu0 0.0
        %559 = vmatpush2.msra.mxu0 0.0
        %560 = vmatprep.subr.mxu0 0.0
        %561 = vmatpush2.msra.mxu0 0.0
        %562 = vmatprep.subr.mxu0 0.0
        %563 = vmatpush2.msra.mxu0 0.0
        %564 = vmatprep.subr.mxu0 0.0
        %565 = vmatpush2.msra.mxu0 0.0
        %566 = vmatprep.subr.mxu0 0.0
        %567 = vmatpush2.msra.mxu0 0.0
        %568 = vmatprep.subr.mxu0 0.0
        %569 = vmatpush2.msra.mxu0 0.0
        %570 = vmatprep.subr.mxu0 0.0
        %571 = vmatpush2.msra.mxu0 0.0
        %572 = vmatprep.subr.mxu0 0.0
        %573 = vmatpush2.msra.mxu0 0.0
        %574 = vmatprep.subr.mxu0 0.0
        %575 = vmatpush2.msra.mxu0 0.0
        %576 = vmatprep.subr.mxu0 0.0
        %577 = vmatpush2.msra.mxu0 0.0
        %578 = vmatprep.subr.mxu0 0.0
        %579 = vmatpush2.msra.mxu0 0.0
        %580 = vmatprep.subr.mxu0 0.0
        %581 = vmatpush2.msra.mxu0 0.0
        %582 = vmatprep.subr.mxu0 0.0
        %583 = vmatpush2.msra.mxu0 0.0
        %584 = vmatprep.subr.mxu0 0.0
        %585 = vmatpush2.msra.mxu0 0.0
        %586 = vmatprep.subr.mxu0 0.0
        %587 = vmatpush2.msra.mxu0 0.0
        %588 = vmatprep.subr.mxu0 0.0
        %589 = vmatpush2.msra.mxu0 0.0
        %590 = vmatprep.mubr.f32.mxu0 0.0
        %591 = vmatmul.mubr.f32.gmra.mxu0 %v521
        %v592 = vpop.f32.mrf.mxu0
        %v593 = vadd.f32 0.0, %v592
        %v594 = vpop.f32.mrf.mxu0
        %595 = vmatprep.mubr.f32.mxu0 0.0
        %596 = vmatmul.mubr.f32.gmra.mxu0 %v524
        %v597 = vpop.f32.mrf.mxu0
        %v598 = vadd.f32 0.0, %v597
        %v599 = vpop.f32.mrf.mxu0
        %600 = vdwg.mxu0
        %603 = vrot.lane.b32.xlu0 %v593, 16
        %v604 = vpop.permute.xlu0 %603
        %605 = vrot.lane.b32.xlu0 %v598, 16
        %v606 = vpop.permute.xlu0 %605
        %v609 = vadd.f32 %v518, %v604
        %v610 = vadd.f32 %v519, %v606
        %vm611 = vcmask 261248
        %612 = vst.msk [vmem:[#allocation2] sm:$0xff] %vm611, %v609
        %613 = vst.msk [vmem:[#allocation2 + $0x8] sm:$0xff] %vm611, %v610
        // Predicated region
        $region45: #{tpu_custom_call.1} parent=39 // pred_check
          %p614 = pneg %p321
        $region46: #{tpu_custom_call.1} parent=39 // pred_check_branch
          %616 = sbr.rel (%p614) target = $region48
        $region47: #{tpu_custom_call.1} parent=39 // pred_region
          %v617 = vld [vmem:[#allocation3] sm:$0xff]
          %v618 = vld [vmem:[#allocation3 + $0x8] sm:$0xff]
          %vm619 = vcmp.ne.f32.partialorder %v617, 0.0
          %vm620 = vcmp.ne.f32.partialorder %v618, 0.0
          %v621 = vrcp.pop %v617
          %v622 = vrcp.pop %v618
          %v623 = vsel %vm619, %v621, 0.0
          %v624 = vsel %vm620, %v622, 0.0
          %v625 = vld [vmem:[#allocation2] sm:$0xff]
          %v626 = vld [vmem:[#allocation2 + $0x8] sm:$0xff]
          %628 = vset.pattern.permute.xlu0 0
          %629 = vperm.xlu0 %628, %v623
          %v630 = vpop.permute.xlu0 %629
          %633 = vset.pattern.permute.xlu0 0
          %634 = vperm.xlu0 %633, %v624
          %v635 = vpop.permute.xlu0 %634
          %v637 = vmul.f32 %v625, %v630
          %v638 = vmul.f32 %v626, %v635
          %vm639 = vcmp.gt.f32.partialorder %v637, 0.0
          %vm640 = vcmp.gt.f32.partialorder %v638, 0.0
          %v641 = vmin.f32 %v637, 0.0
          %v642 = vmin.f32 %v638, 0.0
          %v643 = vmul.f32 %v641, 1.442695
          %v644 = vpow.pop %v643
          %v645 = vmul.f32 %v642, 1.442695
          %v646 = vpow.pop %v645
          %v647 = vsub.f32 %v644, 1.0
          %v648 = vsub.f32 %v646, 1.0
          %v649 = vsel %vm639, %v637, %v647
          %v650 = vsel %vm640, %v638, %v648
          %651 = vst.msk [vmem:[%s291] sm:$0xff] %vm473, %v649
          %652 = vst.msk [vmem:[%s291 + $0x8] sm:$0xff] %vm473, %v650
          %v653 = vld [vmem:[#allocation3] sm:$0xff]
          %v654 = vld [vmem:[#allocation3 + $0x8] sm:$0xff]
          %vm655 = vcmp.ne.f32.partialorder %v653, 0.0
          %vm656 = vcmp.ne.f32.partialorder %v654, 0.0
          %v657 = vrcp.pop %v653
          %v658 = vrcp.pop %v654
          %v659 = vsel %vm655, %v657, 0.0
          %v660 = vsel %vm656, %v658, 0.0
          %v661 = vld [vmem:[#allocation2] sm:$0xff]
          %v662 = vld [vmem:[#allocation2 + $0x8] sm:$0xff]
          %664 = vset.pattern.permute.xlu0 1
          %665 = vperm.xlu0 %664, %v659
          %v666 = vpop.permute.xlu0 %665
          %669 = vset.pattern.permute.xlu0 1
          %670 = vperm.xlu0 %669, %v660
          %v671 = vpop.permute.xlu0 %670
          %v673 = vmul.f32 %v661, %v666
          %v674 = vmul.f32 %v662, %v671
          %vm675 = vcmp.gt.f32.partialorder %v673, 0.0
          %vm676 = vcmp.gt.f32.partialorder %v674, 0.0
          %v677 = vmin.f32 %v673, 0.0
          %v678 = vmin.f32 %v674, 0.0
          %v679 = vmul.f32 %v677, 1.442695
          %v680 = vpow.pop %v679
          %v681 = vmul.f32 %v678, 1.442695
          %v682 = vpow.pop %v681
          %v683 = vsub.f32 %v680, 1.0
          %v684 = vsub.f32 %v682, 1.0
          %v685 = vsel %vm675, %v673, %v683
          %v686 = vsel %vm676, %v674, %v684
          %687 = vst.msk [vmem:[%s291] sm:$0xff] %vm611, %v685
          %688 = vst.msk [vmem:[%s291 + $0x8] sm:$0xff] %vm611, %v686
        $region48: #{tpu_custom_call.1} parent=39 // pred_fallthru
          _
        %s689 = sand.u32 %s168, 1
        %s690 = scalar_lea.sflag [#allocation5], %s689
        %s691 = sand.u32 %s168, 1
        %s692 = smul.addr %s691, 16
        %s693 = scalar_lea.vmem [#allocation4], %s692
        // Predicated region
        $region49: #{tpu_custom_call.1} parent=39 // pred_check
          %p694 = pneg %p178
        $region50: #{tpu_custom_call.1} parent=39 // pred_check_branch
          %696 = sbr.rel (%p694) target = $region52
        $region51: #{tpu_custom_call.1} parent=39 // pred_region
          %s697 = smul.u32 2, %s23
          %s699 = ssub.s32 256, 256
          %700 = vsyncadd %s690, %s699
          %s701 = smul.addr %s697, 128
          %s702 = scalar_lea.hbm %s5, %s701
          %s703 = sshll.u32 %s693, 4
          %s704 = int_to_ptr.vmem [resolvable:$true] %s703
          %709 = dma.vmem_to_hbm [thread:$0]  %s704, 256, %s702, %s690, 128, 128, 8
        $region52: #{tpu_custom_call.1} parent=39 // pred_fallthru
          _
      $region40: #{tpu_custom_call.1} parent=5 // pred_fallthru
        _
      %p710 = scmp.le.s32.totalorder 2, %s14
      // Predicated region
      $region53: #{tpu_custom_call.1} parent=5 // pred_check
        %p711 = pneg %p710
      $region54: #{tpu_custom_call.1} parent=5 // pred_check_branch
        %713 = sbr.rel (%p711) target = $region56
      $region55: #{tpu_custom_call.1} parent=5 // pred_region
        %s714 = ssub.s32 %s14, 2
        // Predicated region
        $region57: #{tpu_custom_call.1} parent=55 // pred_check
          %p715 = pneg %p184
        $region58: #{tpu_custom_call.1} parent=55 // pred_check_branch
          %717 = sbr.rel (%p715) target = $region60
        $region59: #{tpu_custom_call.1} parent=55 // pred_region
          %s718 = sand.u32 %s169, 1
          %s719 = scalar_lea.sflag [#allocation5], %s718
          %s720 = sand.u32 %s169, 1
          %s721 = smul.addr %s720, 16
          %s722 = scalar_lea.vmem [#allocation4], %s721
          %723 = dma.done %s719, 256
        $region60: #{tpu_custom_call.1} parent=55 // pred_fallthru
          _
      $region56: #{tpu_custom_call.1} parent=5 // pred_fallthru
        _
    $region6: #{tpu_custom_call.1} parent=1 // loop_footer
      %s18 = sadd.s32 1, %s14
    $region7: #{tpu_custom_call.1} parent=1 // loop_footer_branch
      %13 = sbr.rel target = $region3
    $region8: #{tpu_custom_call.1} parent=1 // loop_exit
      _
    %724 = vsyncpa [#allocation5], 1
    %s725 = scalar_lea.sflag [#allocation5], 1
    %726 = vsyncpa %s725, 1

</llo_original>
